<compile_context>
chip_gen: v7x
topology: tpu7x:2x2x1
jax: 0.10.0
libtpu: 0.0.40
codegen_flags: <defaults>
</compile_context>

<pallas_src>
import functools

import jax
import jax.numpy as jnp
from jax.experimental import pallas as pl
from jax.experimental.pallas import tpu as pltpu


def _relu_dwconv_kernel(x_ref, w_ref, o_ref, pad_ref, *, H, W, KH, KW, PAD):
    """Fused ReLU + depthwise KHxKW conv on a flattened-spatial NCHW block.

    x_ref:   (nb, C, H*W)            input block (channels on sublanes, H*W on lanes)
    w_ref:   (C, KH*KW)              depthwise weights, tap index on lanes
    o_ref:   (nb, C, H*W)            output block (same layout as input)
    pad_ref: (nb, C, H*W + 2*PAD)    VMEM scratch: zero borders + ReLU(x) interior
    """
    HW = H * W

    # ReLU once, keep in registers (f32): reused for the interior scratch
    # store and for the center tap (saves one shifted VMEM re-load).
    relu_x = jnp.maximum(x_ref[...], 0).astype(jnp.float32)       # (nb, C, HW)

    # Zero-padded copy of ReLU(x). The zero borders absorb the H-direction
    # out-of-range taps; the W-direction row wrap is masked below.
    pad_ref[...] = jnp.zeros_like(pad_ref)
    pad_ref[:, :, pl.ds(PAD, HW)] = relu_x

    w = w_ref[...].astype(jnp.float32)                            # (C, KH*KW), loaded once

    # Column (j) index of every flattened output lane, for W-border masking.
    col = jax.lax.broadcasted_iota(jnp.int32, (1, 1, HW), 2) % W

    acc = None
    for dj in range(KW):
        oj = dj - KW // 2
        part = None
        for di in range(KH):
            oi = di - KH // 2
            s = oi * W + oj                                       # flattened spatial shift
            if s == 0:
                v = relu_x                                        # center tap: straight from registers
            else:
                v = pad_ref[:, :, pl.ds(PAD + s, HW)]             # (nb, C, HW) shifted window
            k = di * KW + dj
            wt = w[:, k:k + 1][None, :, :]                        # (1, C, 1) per-channel tap
            t = v * wt
            part = t if part is None else part + t                # init from first tap
        # Hoisted W-border mask: one select per dj instead of one per tap.
        if oj < 0:
            part = jnp.where(col >= -oj, part, 0.0)
        elif oj > 0:
            part = jnp.where(col < W - oj, part, 0.0)
        acc = part if acc is None else acc + part

    o_ref[...] = acc.astype(o_ref.dtype)


def relu_depthwise_conv(x_nchw, w_oihw):
    """x_nchw: (N, C, H, W); w_oihw: (C, 1, KH, KW). Stride 1, 'same' padding, no bias."""
    N, C, H, W = x_nchw.shape
    KH, KW = int(w_oihw.shape[2]), int(w_oihw.shape[3])
    HW = H * W
    PAD = (KH // 2) * W + (KW // 2)       # max |flattened shift|

    # Free, metadata-only reshapes: no transpose, no pad, no extra XLA kernels.
    x_flat = x_nchw.reshape(N, C, HW)
    w_flat = w_oihw.reshape(C, KH * KW)

    # Amortize per-grid-step overhead over several images when N > 1.
    nb = next(b for b in (64, 32, 16, 8, 4, 2, 1) if N % b == 0)

    kernel = functools.partial(_relu_dwconv_kernel, H=H, W=W, KH=KH, KW=KW, PAD=PAD)

    itemsize = x_nchw.dtype.itemsize
    flops = 2 * N * C * HW * KH * KW
    bytes_accessed = (x_flat.size + w_flat.size + N * C * HW) * itemsize

    out_flat = pl.pallas_call(
        kernel,
        out_shape=jax.ShapeDtypeStruct((N, C, HW), x_nchw.dtype),
        grid=(N // nb,),
        in_specs=[
            pl.BlockSpec((nb, C, HW), lambda n: (n, 0, 0)),
            pl.BlockSpec((C, KH * KW), lambda n: (0, 0)),
        ],
        out_specs=pl.BlockSpec((nb, C, HW), lambda n: (n, 0, 0)),
        scratch_shapes=[pltpu.VMEM((nb, C, HW + 2 * PAD), jnp.float32)],
        compiler_params=pltpu.CompilerParams(dimension_semantics=("parallel",)),
        cost_estimate=pl.CostEstimate(flops=flops, transcendentals=0,
                                      bytes_accessed=bytes_accessed),
    )(x_flat, w_flat)

    return out_flat.reshape(N, C, H, W)


if __name__ == "__main__":
    key = jax.random.PRNGKey(0)
    kx, kw = jax.random.split(key)

    # Shapes implied by the module: input (1, 96, 7, 7), weight (96, 1, 3, 3).
    N, C, H, W = 1, 96, 7, 7
    x = jax.random.normal(kx, (N, C, H, W), dtype=jnp.float32)
    w = jax.random.normal(kw, (C, 1, 3, 3), dtype=jnp.float32) * 0.1

    out = jax.block_until_ready(relu_depthwise_conv(x, w))

    # Reference: ReLU then depthwise conv (NCHW).
    ref = jax.lax.conv_general_dilated(
        jnp.maximum(x, 0.0), w,
        window_strides=(1, 1), padding=((1, 1), (1, 1)),
        dimension_numbers=("NCHW", "OIHW", "NCHW"),
        feature_group_count=C)
    assert out.shape == (N, C, H, W)
    assert jnp.allclose(out, ref, atol=1e-5, rtol=1e-5), "mismatch vs reference"

    print("KERNEL_OK")
</pallas_src>

<mosaic_0001>
module attributes {stable_mosaic.version = 11 : i64} {
  func.func @_relu_dwconv_kernel(%arg0: i32, %arg1: memref<1x96x49xf32, #tpu.memory_space<vmem>>, %arg2: memref<96x9xf32, #tpu.memory_space<vmem>>, %arg3: memref<1x96x49xf32, #tpu.memory_space<vmem>>, %arg4: memref<1x96x65xf32, #tpu.memory_space<vmem>>) attributes {dimension_semantics = [#tpu.dimension_semantics<parallel>], iteration_bounds = array<i64: 1>, scalar_prefetch = 0 : i64, scratch_operands = 1 : i64, tpu.core_type = #tpu.core_type<tc>, window_params = [{transform_indices = @transform_0, window_bounds = array<i64: 1, 96, 49>}, {pipeline_mode = #tpu.pipeline_mode<synchronous>, transform_indices = @transform_1, window_bounds = array<i64: 96, 9>}, {transform_indices = @transform_2, window_bounds = array<i64: 1, 96, 49>}]} {
    %c0 = arith.constant 0 : index
    %c0_0 = arith.constant 0 : index
    %c0_1 = arith.constant 0 : index
    %0 = vector.load %arg1[%c0, %c0_0, %c0_1] : memref<1x96x49xf32, #tpu.memory_space<vmem>>, vector<1x96x49xf32>
    %cst = arith.constant 0.000000e+00 : f32
    %1 = vector.broadcast %cst : f32 to vector<1x96x49xf32>
    %2 = arith.maximumf %0, %1 : vector<1x96x49xf32>
    %cst_2 = arith.constant 0.000000e+00 : f32
    %3 = vector.broadcast %cst_2 : f32 to vector<1x96x65xf32>
    %c0_3 = arith.constant 0 : index
    %c0_4 = arith.constant 0 : index
    %c0_5 = arith.constant 0 : index
    %4 = vector.load %arg4[%c0_3, %c0_4, %c0_5] : memref<1x96x65xf32, #tpu.memory_space<vmem>>, vector<1x96x65xf32>
    tpu.vector_store %arg4[%c0_3, %c0_4, %c0_5], %3 {strides = array<i32>} : memref<1x96x65xf32, #tpu.memory_space<vmem>>, vector<1x96x65xf32>,
    %c0_6 = arith.constant 0 : index
    %c0_7 = arith.constant 0 : index
    %c8 = arith.constant 8 : index
    %5 = vector.load %arg4[%c0_6, %c0_7, %c8] : memref<1x96x65xf32, #tpu.memory_space<vmem>>, vector<1x96x49xf32>
    tpu.vector_store %arg4[%c0_6, %c0_7, %c8], %2 {strides = array<i32>} : memref<1x96x65xf32, #tpu.memory_space<vmem>>, vector<1x96x49xf32>,
    %c0_8 = arith.constant 0 : index
    %c0_9 = arith.constant 0 : index
    %6 = vector.load %arg2[%c0_8, %c0_9] : memref<96x9xf32, #tpu.memory_space<vmem>>, vector<96x9xf32>
    %7 = tpu.iota {dimensions = array<i32: 2>} : vector<1x1x49xi32>
    %c7_i32 = arith.constant 7 : i32
    %c0_i32 = arith.constant 0 : i32
    %8 = arith.cmpi eq, %c7_i32, %c0_i32 : i32
    %c1_i32 = arith.constant 1 : i32
    %9 = arith.select %8, %c1_i32, %c7_i32 : i32
    %10 = vector.broadcast %9 : i32 to vector<1x1x49xi32>
    %11 = arith.remsi %7, %10 : vector<1x1x49xi32>
    %c0_i32_10 = arith.constant 0 : i32
    %12 = vector.broadcast %c0_i32_10 : i32 to vector<1x1x49xi32>
    %13 = arith.cmpi ne, %11, %12 : vector<1x1x49xi32>
    %c0_i32_11 = arith.constant 0 : i32
    %14 = vector.broadcast %c0_i32_11 : i32 to vector<1x1x49xi32>
    %15 = arith.cmpi slt, %11, %14 : vector<1x1x49xi32>
    %c0_i32_12 = arith.constant 0 : i32
    %16 = arith.cmpi slt, %9, %c0_i32_12 : i32
    %17 = vector.broadcast %16 : i1 to vector<1x1x49xi1>
    %18 = vector.broadcast %17 : vector<1x1x49xi1> to vector<1x1x49xi1>
    %19 = arith.xori %15, %18 : vector<1x1x49xi1>
    %20 = arith.andi %19, %13 : vector<1x1x49xi1>
    %21 = vector.broadcast %9 : i32 to vector<1x1x49xi32>
    %22 = arith.addi %11, %21 : vector<1x1x49xi32>
    %23 = arith.select %20, %22, %11 : vector<1x1x49xi1>, vector<1x1x49xi32>
    %c0_13 = arith.constant 0 : index
    %c0_14 = arith.constant 0 : index
    %c0_15 = arith.constant 0 : index
    %24 = vector.load %arg4[%c0_13, %c0_14, %c0_15] : memref<1x96x65xf32, #tpu.memory_space<vmem>>, vector<1x96x49xf32>
    %25 = vector.extract_strided_slice %6 {offsets = [0, 0], sizes = [96, 1], strides = [1, 1]} : vector<96x9xf32> to vector<96x1xf32>
    %26 = vector.shape_cast %25 : vector<96x1xf32> to vector<1x96x1xf32>
    %27 = vector.broadcast %26 : vector<1x96x1xf32> to vector<1x96x49xf32>
    %28 = arith.mulf %24, %27 : vector<1x96x49xf32>
    %c0_16 = arith.constant 0 : index
    %c0_17 = arith.constant 0 : index
    %c7 = arith.constant 7 : index
    %29 = vector.load %arg4[%c0_16, %c0_17, %c7] : memref<1x96x65xf32, #tpu.memory_space<vmem>>, vector<1x96x49xf32>
    %30 = vector.extract_strided_slice %6 {offsets = [0, 3], sizes = [96, 1], strides = [1, 1]} : vector<96x9xf32> to vector<96x1xf32>
    %31 = vector.shape_cast %30 : vector<96x1xf32> to vector<1x96x1xf32>
    %32 = vector.broadcast %31 : vector<1x96x1xf32> to vector<1x96x49xf32>
    %33 = arith.mulf %29, %32 : vector<1x96x49xf32>
    %34 = arith.addf %28, %33 : vector<1x96x49xf32>
    %c0_18 = arith.constant 0 : index
    %c0_19 = arith.constant 0 : index
    %c14 = arith.constant 14 : index
    %35 = vector.load %arg4[%c0_18, %c0_19, %c14] : memref<1x96x65xf32, #tpu.memory_space<vmem>>, vector<1x96x49xf32>
    %36 = vector.extract_strided_slice %6 {offsets = [0, 6], sizes = [96, 1], strides = [1, 1]} : vector<96x9xf32> to vector<96x1xf32>
    %37 = vector.shape_cast %36 : vector<96x1xf32> to vector<1x96x1xf32>
    %38 = vector.broadcast %37 : vector<1x96x1xf32> to vector<1x96x49xf32>
    %39 = arith.mulf %35, %38 : vector<1x96x49xf32>
    %40 = arith.addf %34, %39 : vector<1x96x49xf32>
    %c1_i32_20 = arith.constant 1 : i32
    %41 = vector.broadcast %c1_i32_20 : i32 to vector<1x1x49xi32>
    %42 = arith.cmpi sge, %23, %41 : vector<1x1x49xi32>
    %cst_21 = arith.constant 0.000000e+00 : f32
    %43 = vector.shape_cast %42 : vector<1x1x49xi1> to vector<1x1x49xi1>
    %44 = vector.broadcast %43 : vector<1x1x49xi1> to vector<1x96x49xi1>
    %45 = vector.broadcast %cst_21 : f32 to vector<1x96x49xf32>
    %46 = arith.select %44, %40, %45 : vector<1x96x49xi1>, vector<1x96x49xf32>
    %c0_22 = arith.constant 0 : index
    %c0_23 = arith.constant 0 : index
    %c1 = arith.constant 1 : index
    %47 = vector.load %arg4[%c0_22, %c0_23, %c1] : memref<1x96x65xf32, #tpu.memory_space<vmem>>, vector<1x96x49xf32>
    %48 = vector.extract_strided_slice %6 {offsets = [0, 1], sizes = [96, 1], strides = [1, 1]} : vector<96x9xf32> to vector<96x1xf32>
    %49 = vector.shape_cast %48 : vector<96x1xf32> to vector<1x96x1xf32>
    %50 = vector.broadcast %49 : vector<1x96x1xf32> to vector<1x96x49xf32>
    %51 = arith.mulf %47, %50 : vector<1x96x49xf32>
    %52 = vector.extract_strided_slice %6 {offsets = [0, 4], sizes = [96, 1], strides = [1, 1]} : vector<96x9xf32> to vector<96x1xf32>
    %53 = vector.shape_cast %52 : vector<96x1xf32> to vector<1x96x1xf32>
    %54 = vector.broadcast %53 : vector<1x96x1xf32> to vector<1x96x49xf32>
    %55 = arith.mulf %2, %54 : vector<1x96x49xf32>
    %56 = arith.addf %51, %55 : vector<1x96x49xf32>
    %c0_24 = arith.constant 0 : index
    %c0_25 = arith.constant 0 : index
    %c15 = arith.constant 15 : index
    %57 = vector.load %arg4[%c0_24, %c0_25, %c15] : memref<1x96x65xf32, #tpu.memory_space<vmem>>, vector<1x96x49xf32>
    %58 = vector.extract_strided_slice %6 {offsets = [0, 7], sizes = [96, 1], strides = [1, 1]} : vector<96x9xf32> to vector<96x1xf32>
    %59 = vector.shape_cast %58 : vector<96x1xf32> to vector<1x96x1xf32>
    %60 = vector.broadcast %59 : vector<1x96x1xf32> to vector<1x96x49xf32>
    %61 = arith.mulf %57, %60 : vector<1x96x49xf32>
    %62 = arith.addf %56, %61 : vector<1x96x49xf32>
    %63 = arith.addf %46, %62 : vector<1x96x49xf32>
    %c0_26 = arith.constant 0 : index
    %c0_27 = arith.constant 0 : index
    %c2 = arith.constant 2 : index
    %64 = vector.load %arg4[%c0_26, %c0_27, %c2] : memref<1x96x65xf32, #tpu.memory_space<vmem>>, vector<1x96x49xf32>
    %65 = vector.extract_strided_slice %6 {offsets = [0, 2], sizes = [96, 1], strides = [1, 1]} : vector<96x9xf32> to vector<96x1xf32>
    %66 = vector.shape_cast %65 : vector<96x1xf32> to vector<1x96x1xf32>
    %67 = vector.broadcast %66 : vector<1x96x1xf32> to vector<1x96x49xf32>
    %68 = arith.mulf %64, %67 : vector<1x96x49xf32>
    %c0_28 = arith.constant 0 : index
    %c0_29 = arith.constant 0 : index
    %c9 = arith.constant 9 : index
    %69 = vector.load %arg4[%c0_28, %c0_29, %c9] : memref<1x96x65xf32, #tpu.memory_space<vmem>>, vector<1x96x49xf32>
    %70 = vector.extract_strided_slice %6 {offsets = [0, 5], sizes = [96, 1], strides = [1, 1]} : vector<96x9xf32> to vector<96x1xf32>
    %71 = vector.shape_cast %70 : vector<96x1xf32> to vector<1x96x1xf32>
    %72 = vector.broadcast %71 : vector<1x96x1xf32> to vector<1x96x49xf32>
    %73 = arith.mulf %69, %72 : vector<1x96x49xf32>
    %74 = arith.addf %68, %73 : vector<1x96x49xf32>
    %c0_30 = arith.constant 0 : index
    %c0_31 = arith.constant 0 : index
    %c16 = arith.constant 16 : index
    %75 = vector.load %arg4[%c0_30, %c0_31, %c16] : memref<1x96x65xf32, #tpu.memory_space<vmem>>, vector<1x96x49xf32>
    %76 = vector.extract_strided_slice %6 {offsets = [0, 8], sizes = [96, 1], strides = [1, 1]} : vector<96x9xf32> to vector<96x1xf32>
    %77 = vector.shape_cast %76 : vector<96x1xf32> to vector<1x96x1xf32>
    %78 = vector.broadcast %77 : vector<1x96x1xf32> to vector<1x96x49xf32>
    %79 = arith.mulf %75, %78 : vector<1x96x49xf32>
    %80 = arith.addf %74, %79 : vector<1x96x49xf32>
    %c6_i32 = arith.constant 6 : i32
    %81 = vector.broadcast %c6_i32 : i32 to vector<1x1x49xi32>
    %82 = arith.cmpi slt, %23, %81 : vector<1x1x49xi32>
    %cst_32 = arith.constant 0.000000e+00 : f32
    %83 = vector.shape_cast %82 : vector<1x1x49xi1> to vector<1x1x49xi1>
    %84 = vector.broadcast %83 : vector<1x1x49xi1> to vector<1x96x49xi1>
    %85 = vector.broadcast %cst_32 : f32 to vector<1x96x49xf32>
    %86 = arith.select %84, %80, %85 : vector<1x96x49xi1>, vector<1x96x49xf32>
    %87 = arith.addf %63, %86 : vector<1x96x49xf32>
    %c0_33 = arith.constant 0 : index
    %c0_34 = arith.constant 0 : index
    %c0_35 = arith.constant 0 : index
    %88 = vector.load %arg3[%c0_33, %c0_34, %c0_35] : memref<1x96x49xf32, #tpu.memory_space<vmem>>, vector<1x96x49xf32>
    tpu.vector_store %arg3[%c0_33, %c0_34, %c0_35], %87 {strides = array<i32>} : memref<1x96x49xf32, #tpu.memory_space<vmem>>, vector<1x96x49xf32>,
    return
  }
  func.func @transform_0(%arg0: i32) -> (i32, i32, i32) {
    %c0_i32 = arith.constant 0 : i32
    %c0_i32_0 = arith.constant 0 : i32
    %c0_i32_1 = arith.constant 0 : i32
    return %arg0, %c0_i32, %c0_i32_0 : i32, i32, i32
  }
  func.func @transform_1(%arg0: i32) -> (i32, i32) {
    %c0_i32 = arith.constant 0 : i32
    %c0_i32_0 = arith.constant 0 : i32
    %c0_i32_1 = arith.constant 0 : i32
    return %c0_i32, %c0_i32_0 : i32, i32
  }
  func.func @transform_2(%arg0: i32) -> (i32, i32, i32) {
    %c0_i32 = arith.constant 0 : i32
    %c0_i32_0 = arith.constant 0 : i32
    %c0_i32_1 = arith.constant 0 : i32
    return %arg0, %c0_i32, %c0_i32_0 : i32, i32, i32
  }
}

</mosaic_0001>

<llo_original>
// kernel: tpu_custom_call.1
$region0: #{tpu_custom_call.1}
  #allocation0 [shape = 'u32[]', space=smem, size = 0x4, offset = 0x4, fixed_abs, tag = 'smem constant byte address 0x4 - core index']
  #allocation1 [shape = 'u32[144,128]{1,0:T(1,128)}', space=vmem, size = 0x12000, scoped, tag = 'internal scratch']
  #allocation2 [shape = 'f32[1,96,65]{2,1,0:T(8,128)}', space=vmem, size = 0xc000, scoped, tag = 'scratch operand']
  %s0 = inlined_call_operand.vmem [shape: f32[1,96,49], index: 0, kind: input, shape index: {}]
  %s1 = inlined_call_operand.vmem [shape: f32[96,9], index: 1, kind: input, shape index: {}]
  %s2 = inlined_call_operand.vmem [shape: f32[1,96,49], index: 2, kind: output, shape index: {}]
  %s3 = sld [smem:[#allocation0]]
  $region18: #{tpu_custom_call.1} parent=0
    _
  %s5 = ssub.s32 1, %s3
  %s6 = scalar_select 0, %s5, %s3
  // Predicated region
  $region2: #{tpu_custom_call.1} parent=0 // pred_check
    _
  $region3: #{tpu_custom_call.1} parent=0 // pred_check_branch
    %8 = sbr.rel (0) target = $region5
  $region4: #{tpu_custom_call.1} parent=0 // pred_region
    _
  $region5: #{tpu_custom_call.1} parent=0 // pred_fallthru
    _
  // Predicated region
  $region6: #{tpu_custom_call.1} parent=0 // pred_check
    _
  $region7: #{tpu_custom_call.1} parent=0 // pred_check_branch
    %10 = sbr.rel (0) target = $region9
  $region8: #{tpu_custom_call.1} parent=0 // pred_region
    _
  $region9: #{tpu_custom_call.1} parent=0 // pred_fallthru
    _
  %v11 = vld [vmem:[%s0] sm:$0xff]
  %v12 = vld [vmem:[%s0 + $0x8] sm:$0xff]
  %v13 = vld [vmem:[%s0 + $0x10] sm:$0xff]
  %v14 = vld [vmem:[%s0 + $0x18] sm:$0xff]
  %v15 = vld [vmem:[%s0 + $0x20] sm:$0xff]
  %v16 = vld [vmem:[%s0 + $0x28] sm:$0xff]
  %v17 = vld [vmem:[%s0 + $0x30] sm:$0xff]
  %v18 = vld [vmem:[%s0 + $0x38] sm:$0xff]
  %v19 = vld [vmem:[%s0 + $0x40] sm:$0xff]
  %v20 = vld [vmem:[%s0 + $0x48] sm:$0xff]
  %v21 = vld [vmem:[%s0 + $0x50] sm:$0xff]
  %v22 = vld [vmem:[%s0 + $0x58] sm:$0xff]
  %v23 = vmax.f32 %v11, 0.0
  %v24 = vmax.f32 %v12, 0.0
  %v25 = vmax.f32 %v13, 0.0
  %v26 = vmax.f32 %v14, 0.0
  %v27 = vmax.f32 %v15, 0.0
  %v28 = vmax.f32 %v16, 0.0
  %v29 = vmax.f32 %v17, 0.0
  %v30 = vmax.f32 %v18, 0.0
  %v31 = vmax.f32 %v19, 0.0
  %v32 = vmax.f32 %v20, 0.0
  %v33 = vmax.f32 %v21, 0.0
  %v34 = vmax.f32 %v22, 0.0
  %vm35 = vcmask 531456
  %36 = vst.msk [vmem:[#allocation2] sm:$0xff] %vm35, 0.0
  %37 = vst.msk [vmem:[#allocation2 + $0x8] sm:$0xff] %vm35, 0.0
  %38 = vst.msk [vmem:[#allocation2 + $0x10] sm:$0xff] %vm35, 0.0
  %39 = vst.msk [vmem:[#allocation2 + $0x18] sm:$0xff] %vm35, 0.0
  %40 = vst.msk [vmem:[#allocation2 + $0x20] sm:$0xff] %vm35, 0.0
  %41 = vst.msk [vmem:[#allocation2 + $0x28] sm:$0xff] %vm35, 0.0
  %42 = vst.msk [vmem:[#allocation2 + $0x30] sm:$0xff] %vm35, 0.0
  %43 = vst.msk [vmem:[#allocation2 + $0x38] sm:$0xff] %vm35, 0.0
  %44 = vst.msk [vmem:[#allocation2 + $0x40] sm:$0xff] %vm35, 0.0
  %45 = vst.msk [vmem:[#allocation2 + $0x48] sm:$0xff] %vm35, 0.0
  %46 = vst.msk [vmem:[#allocation2 + $0x50] sm:$0xff] %vm35, 0.0
  %47 = vst.msk [vmem:[#allocation2 + $0x58] sm:$0xff] %vm35, 0.0
  %60 = vrot.lane.b32.xlu0 %v23, 8
  %v61 = vpop.permute.xlu0 %60
  %62 = vrot.lane.b32.xlu0 %v24, 8
  %v63 = vpop.permute.xlu0 %62
  %64 = vrot.lane.b32.xlu0 %v25, 8
  %v65 = vpop.permute.xlu0 %64
  %66 = vrot.lane.b32.xlu0 %v26, 8
  %v67 = vpop.permute.xlu0 %66
  %68 = vrot.lane.b32.xlu0 %v27, 8
  %v69 = vpop.permute.xlu0 %68
  %70 = vrot.lane.b32.xlu0 %v28, 8
  %v71 = vpop.permute.xlu0 %70
  %72 = vrot.lane.b32.xlu0 %v29, 8
  %v73 = vpop.permute.xlu0 %72
  %74 = vrot.lane.b32.xlu0 %v30, 8
  %v75 = vpop.permute.xlu0 %74
  %76 = vrot.lane.b32.xlu0 %v31, 8
  %v77 = vpop.permute.xlu0 %76
  %78 = vrot.lane.b32.xlu0 %v32, 8
  %v79 = vpop.permute.xlu0 %78
  %80 = vrot.lane.b32.xlu0 %v33, 8
  %v81 = vpop.permute.xlu0 %80
  %82 = vrot.lane.b32.xlu0 %v34, 8
  %v83 = vpop.permute.xlu0 %82
  %vm96 = vcmask 465984
  %97 = vst.msk [vmem:[#allocation2] sm:$0xff] %vm96, %v61
  %98 = vst.msk [vmem:[#allocation2 + $0x8] sm:$0xff] %vm96, %v63
  %99 = vst.msk [vmem:[#allocation2 + $0x10] sm:$0xff] %vm96, %v65
  %100 = vst.msk [vmem:[#allocation2 + $0x18] sm:$0xff] %vm96, %v67
  %101 = vst.msk [vmem:[#allocation2 + $0x20] sm:$0xff] %vm96, %v69
  %102 = vst.msk [vmem:[#allocation2 + $0x28] sm:$0xff] %vm96, %v71
  %103 = vst.msk [vmem:[#allocation2 + $0x30] sm:$0xff] %vm96, %v73
  %104 = vst.msk [vmem:[#allocation2 + $0x38] sm:$0xff] %vm96, %v75
  %105 = vst.msk [vmem:[#allocation2 + $0x40] sm:$0xff] %vm96, %v77
  %106 = vst.msk [vmem:[#allocation2 + $0x48] sm:$0xff] %vm96, %v79
  %107 = vst.msk [vmem:[#allocation2 + $0x50] sm:$0xff] %vm96, %v81
  %108 = vst.msk [vmem:[#allocation2 + $0x58] sm:$0xff] %vm96, %v83
  %v109 = vld [vmem:[%s1] sm:$0xff]
  %v110 = vld [vmem:[%s1 + $0x8] sm:$0xff]
  %v111 = vld [vmem:[%s1 + $0x10] sm:$0xff]
  %v112 = vld [vmem:[%s1 + $0x18] sm:$0xff]
  %v113 = vld [vmem:[%s1 + $0x20] sm:$0xff]
  %v114 = vld [vmem:[%s1 + $0x28] sm:$0xff]
  %v115 = vld [vmem:[%s1 + $0x30] sm:$0xff]
  %v116 = vld [vmem:[%s1 + $0x38] sm:$0xff]
  %v117 = vld [vmem:[%s1 + $0x40] sm:$0xff]
  %v118 = vld [vmem:[%s1 + $0x48] sm:$0xff]
  %v119 = vld [vmem:[%s1 + $0x50] sm:$0xff]
  %v120 = vld [vmem:[%s1 + $0x58] sm:$0xff]
  %v121 = vlaneseq
  %v122 = vand.u32 %v121, 127
  %vm123 = vcmp.lt.s32.totalorder %v122, 0
  %v124 = vsub.s32 0, %v122
  %v125 = vsel %vm123, %v124, %v122
  %v126 = vmul.u32.u64.compose %v125, 2454267026
  %v127 = vextract.low.u32 %v126
  %v128 = vextract.high.u32 %v126
  %vm129 = vc.u32 %v127, 2454267026
  %v130 = vsel %vm129, 1, 0
  %v131 = vadd.s32 %v128, %v130
  %v132 = vshrl.u32 %v131, 2
  %v133 = vmul.u32 %v132, 7
  %v134 = vsub.s32 %v125, %v133
  %v135 = vsub.s32 0, %v134
  %v136 = vsel %vm123, %v135, %v134
  %vm137 = vcmp.ne.s32.totalorder %v136, 0
  %vm138 = vcmp.lt.s32.totalorder %v136, 0
  %vm139 = vmand %vm138, %vm137
  %v140 = vadd.s32 %v136, 7
  %v141 = vsel %vm139, %v140, %v136
  %v142 = vld [vmem:[#allocation2] sm:$0xff]
  %v143 = vld [vmem:[#allocation2 + $0x8] sm:$0xff]
  %v144 = vld [vmem:[#allocation2 + $0x10] sm:$0xff]
  %v145 = vld [vmem:[#allocation2 + $0x18] sm:$0xff]
  %v146 = vld [vmem:[#allocation2 + $0x20] sm:$0xff]
  %v147 = vld [vmem:[#allocation2 + $0x28] sm:$0xff]
  %v148 = vld [vmem:[#allocation2 + $0x30] sm:$0xff]
  %v149 = vld [vmem:[#allocation2 + $0x38] sm:$0xff]
  %v150 = vld [vmem:[#allocation2 + $0x40] sm:$0xff]
  %v151 = vld [vmem:[#allocation2 + $0x48] sm:$0xff]
  %v152 = vld [vmem:[#allocation2 + $0x50] sm:$0xff]
  %v153 = vld [vmem:[#allocation2 + $0x58] sm:$0xff]
  %155 = vset.pattern.permute.xlu0 0
  %156 = vperm.xlu0 %155, %v109
  %v157 = vpop.permute.xlu0 %156
  %160 = vset.pattern.permute.xlu0 0
  %161 = vperm.xlu0 %160, %v110
  %v162 = vpop.permute.xlu0 %161
  %165 = vset.pattern.permute.xlu0 0
  %166 = vperm.xlu0 %165, %v111
  %v167 = vpop.permute.xlu0 %166
  %170 = vset.pattern.permute.xlu0 0
  %171 = vperm.xlu0 %170, %v112
  %v172 = vpop.permute.xlu0 %171
  %175 = vset.pattern.permute.xlu0 0
  %176 = vperm.xlu0 %175, %v113
  %v177 = vpop.permute.xlu0 %176
  %180 = vset.pattern.permute.xlu0 0
  %181 = vperm.xlu0 %180, %v114
  %v182 = vpop.permute.xlu0 %181
  %185 = vset.pattern.permute.xlu0 0
  %186 = vperm.xlu0 %185, %v115
  %v187 = vpop.permute.xlu0 %186
  %190 = vset.pattern.permute.xlu0 0
  %191 = vperm.xlu0 %190, %v116
  %v192 = vpop.permute.xlu0 %191
  %195 = vset.pattern.permute.xlu0 0
  %196 = vperm.xlu0 %195, %v117
  %v197 = vpop.permute.xlu0 %196
  %200 = vset.pattern.permute.xlu0 0
  %201 = vperm.xlu0 %200, %v118
  %v202 = vpop.permute.xlu0 %201
  %205 = vset.pattern.permute.xlu0 0
  %206 = vperm.xlu0 %205, %v119
  %v207 = vpop.permute.xlu0 %206
  %210 = vset.pattern.permute.xlu0 0
  %211 = vperm.xlu0 %210, %v120
  %v212 = vpop.permute.xlu0 %211
  %v214 = vmul.f32 %v142, %v157
  %v215 = vmul.f32 %v143, %v162
  %v216 = vmul.f32 %v144, %v167
  %v217 = vmul.f32 %v145, %v172
  %v218 = vmul.f32 %v146, %v177
  %v219 = vmul.f32 %v147, %v182
  %v220 = vmul.f32 %v148, %v187
  %v221 = vmul.f32 %v149, %v192
  %v222 = vmul.f32 %v150, %v197
  %v223 = vmul.f32 %v151, %v202
  %v224 = vmul.f32 %v152, %v207
  %v225 = vmul.f32 %v153, %v212
  %226 = vset.pattern.permute.xlu0 3
  %227 = vperm.xlu0 %226, %v109
  %v228 = vpop.permute.xlu0 %227
  %230 = vset.pattern.permute.xlu0 3
  %231 = vperm.xlu0 %230, %v110
  %v232 = vpop.permute.xlu0 %231
  %234 = vset.pattern.permute.xlu0 3
  %235 = vperm.xlu0 %234, %v111
  %v236 = vpop.permute.xlu0 %235
  %238 = vset.pattern.permute.xlu0 3
  %239 = vperm.xlu0 %238, %v112
  %v240 = vpop.permute.xlu0 %239
  %242 = vset.pattern.permute.xlu0 3
  %243 = vperm.xlu0 %242, %v113
  %v244 = vpop.permute.xlu0 %243
  %246 = vset.pattern.permute.xlu0 3
  %247 = vperm.xlu0 %246, %v114
  %v248 = vpop.permute.xlu0 %247
  %250 = vset.pattern.permute.xlu0 3
  %251 = vperm.xlu0 %250, %v115
  %v252 = vpop.permute.xlu0 %251
  %254 = vset.pattern.permute.xlu0 3
  %255 = vperm.xlu0 %254, %v116
  %v256 = vpop.permute.xlu0 %255
  %258 = vset.pattern.permute.xlu0 3
  %259 = vperm.xlu0 %258, %v117
  %v260 = vpop.permute.xlu0 %259
  %262 = vset.pattern.permute.xlu0 3
  %263 = vperm.xlu0 %262, %v118
  %v264 = vpop.permute.xlu0 %263
  %266 = vset.pattern.permute.xlu0 3
  %267 = vperm.xlu0 %266, %v119
  %v268 = vpop.permute.xlu0 %267
  %270 = vset.pattern.permute.xlu0 3
  %271 = vperm.xlu0 %270, %v120
  %v272 = vpop.permute.xlu0 %271
  %v274 = vmul.f32 %v142, %v228
  %v275 = vmul.f32 %v143, %v232
  %v276 = vmul.f32 %v144, %v236
  %v277 = vmul.f32 %v145, %v240
  %v278 = vmul.f32 %v146, %v244
  %v279 = vmul.f32 %v147, %v248
  %v280 = vmul.f32 %v148, %v252
  %v281 = vmul.f32 %v149, %v256
  %v282 = vmul.f32 %v150, %v260
  %v283 = vmul.f32 %v151, %v264
  %v284 = vmul.f32 %v152, %v268
  %v285 = vmul.f32 %v153, %v272
  %298 = vrot.lane.b32.xlu0 %v274, 121
  %v299 = vpop.permute.xlu0 %298
  %300 = vrot.lane.b32.xlu0 %v275, 121
  %v301 = vpop.permute.xlu0 %300
  %302 = vrot.lane.b32.xlu0 %v276, 121
  %v303 = vpop.permute.xlu0 %302
  %304 = vrot.lane.b32.xlu0 %v277, 121
  %v305 = vpop.permute.xlu0 %304
  %306 = vrot.lane.b32.xlu0 %v278, 121
  %v307 = vpop.permute.xlu0 %306
  %308 = vrot.lane.b32.xlu0 %v279, 121
  %v309 = vpop.permute.xlu0 %308
  %310 = vrot.lane.b32.xlu0 %v280, 121
  %v311 = vpop.permute.xlu0 %310
  %312 = vrot.lane.b32.xlu0 %v281, 121
  %v313 = vpop.permute.xlu0 %312
  %314 = vrot.lane.b32.xlu0 %v282, 121
  %v315 = vpop.permute.xlu0 %314
  %316 = vrot.lane.b32.xlu0 %v283, 121
  %v317 = vpop.permute.xlu0 %316
  %318 = vrot.lane.b32.xlu0 %v284, 121
  %v319 = vpop.permute.xlu0 %318
  %320 = vrot.lane.b32.xlu0 %v285, 121
  %v321 = vpop.permute.xlu0 %320
  %v334 = vadd.f32 %v214, %v299
  %v335 = vadd.f32 %v215, %v301
  %v336 = vadd.f32 %v216, %v303
  %v337 = vadd.f32 %v217, %v305
  %v338 = vadd.f32 %v218, %v307
  %v339 = vadd.f32 %v219, %v309
  %v340 = vadd.f32 %v220, %v311
  %v341 = vadd.f32 %v221, %v313
  %v342 = vadd.f32 %v222, %v315
  %v343 = vadd.f32 %v223, %v317
  %v344 = vadd.f32 %v224, %v319
  %v345 = vadd.f32 %v225, %v321
  %346 = vset.pattern.permute.xlu0 6
  %347 = vperm.xlu0 %346, %v109
  %v348 = vpop.permute.xlu0 %347
  %350 = vset.pattern.permute.xlu0 6
  %351 = vperm.xlu0 %350, %v110
  %v352 = vpop.permute.xlu0 %351
  %354 = vset.pattern.permute.xlu0 6
  %355 = vperm.xlu0 %354, %v111
  %v356 = vpop.permute.xlu0 %355
  %358 = vset.pattern.permute.xlu0 6
  %359 = vperm.xlu0 %358, %v112
  %v360 = vpop.permute.xlu0 %359
  %362 = vset.pattern.permute.xlu0 6
  %363 = vperm.xlu0 %362, %v113
  %v364 = vpop.permute.xlu0 %363
  %366 = vset.pattern.permute.xlu0 6
  %367 = vperm.xlu0 %366, %v114
  %v368 = vpop.permute.xlu0 %367
  %370 = vset.pattern.permute.xlu0 6
  %371 = vperm.xlu0 %370, %v115
  %v372 = vpop.permute.xlu0 %371
  %374 = vset.pattern.permute.xlu0 6
  %375 = vperm.xlu0 %374, %v116
  %v376 = vpop.permute.xlu0 %375
  %378 = vset.pattern.permute.xlu0 6
  %379 = vperm.xlu0 %378, %v117
  %v380 = vpop.permute.xlu0 %379
  %382 = vset.pattern.permute.xlu0 6
  %383 = vperm.xlu0 %382, %v118
  %v384 = vpop.permute.xlu0 %383
  %386 = vset.pattern.permute.xlu0 6
  %387 = vperm.xlu0 %386, %v119
  %v388 = vpop.permute.xlu0 %387
  %390 = vset.pattern.permute.xlu0 6
  %391 = vperm.xlu0 %390, %v120
  %v392 = vpop.permute.xlu0 %391
  %v394 = vmul.f32 %v142, %v348
  %v395 = vmul.f32 %v143, %v352
  %v396 = vmul.f32 %v144, %v356
  %v397 = vmul.f32 %v145, %v360
  %v398 = vmul.f32 %v146, %v364
  %v399 = vmul.f32 %v147, %v368
  %v400 = vmul.f32 %v148, %v372
  %v401 = vmul.f32 %v149, %v376
  %v402 = vmul.f32 %v150, %v380
  %v403 = vmul.f32 %v151, %v384
  %v404 = vmul.f32 %v152, %v388
  %v405 = vmul.f32 %v153, %v392
  %418 = vrot.lane.b32.xlu0 %v394, 114
  %v419 = vpop.permute.xlu0 %418
  %420 = vrot.lane.b32.xlu0 %v395, 114
  %v421 = vpop.permute.xlu0 %420
  %422 = vrot.lane.b32.xlu0 %v396, 114
  %v423 = vpop.permute.xlu0 %422
  %424 = vrot.lane.b32.xlu0 %v397, 114
  %v425 = vpop.permute.xlu0 %424
  %426 = vrot.lane.b32.xlu0 %v398, 114
  %v427 = vpop.permute.xlu0 %426
  %428 = vrot.lane.b32.xlu0 %v399, 114
  %v429 = vpop.permute.xlu0 %428
  %430 = vrot.lane.b32.xlu0 %v400, 114
  %v431 = vpop.permute.xlu0 %430
  %432 = vrot.lane.b32.xlu0 %v401, 114
  %v433 = vpop.permute.xlu0 %432
  %434 = vrot.lane.b32.xlu0 %v402, 114
  %v435 = vpop.permute.xlu0 %434
  %436 = vrot.lane.b32.xlu0 %v403, 114
  %v437 = vpop.permute.xlu0 %436
  %438 = vrot.lane.b32.xlu0 %v404, 114
  %v439 = vpop.permute.xlu0 %438
  %440 = vrot.lane.b32.xlu0 %v405, 114
  %v441 = vpop.permute.xlu0 %440
  %v454 = vadd.f32 %v334, %v419
  %v455 = vadd.f32 %v335, %v421
  %v456 = vadd.f32 %v336, %v423
  %v457 = vadd.f32 %v337, %v425
  %v458 = vadd.f32 %v338, %v427
  %v459 = vadd.f32 %v339, %v429
  %v460 = vadd.f32 %v340, %v431
  %v461 = vadd.f32 %v341, %v433
  %v462 = vadd.f32 %v342, %v435
  %v463 = vadd.f32 %v343, %v437
  %v464 = vadd.f32 %v344, %v439
  %v465 = vadd.f32 %v345, %v441
  %vm466 = vcmp.ge.s32.totalorder %v141, 1
  %v467 = vsel %vm466, 1, 0
  %vm468 = vcmp.eq.s32.totalorder %v467, 1
  %v469 = vsel %vm468, %v454, 0.0
  %v470 = vsel %vm468, %v455, 0.0
  %v471 = vsel %vm468, %v456, 0.0
  %v472 = vsel %vm468, %v457, 0.0
  %v473 = vsel %vm468, %v458, 0.0
  %v474 = vsel %vm468, %v459, 0.0
  %v475 = vsel %vm468, %v460, 0.0
  %v476 = vsel %vm468, %v461, 0.0
  %v477 = vsel %vm468, %v462, 0.0
  %v478 = vsel %vm468, %v463, 0.0
  %v479 = vsel %vm468, %v464, 0.0
  %v480 = vsel %vm468, %v465, 0.0
  %481 = vset.pattern.permute.xlu0 1
  %482 = vperm.xlu0 %481, %v109
  %v483 = vpop.permute.xlu0 %482
  %485 = vset.pattern.permute.xlu0 1
  %486 = vperm.xlu0 %485, %v110
  %v487 = vpop.permute.xlu0 %486
  %489 = vset.pattern.permute.xlu0 1
  %490 = vperm.xlu0 %489, %v111
  %v491 = vpop.permute.xlu0 %490
  %493 = vset.pattern.permute.xlu0 1
  %494 = vperm.xlu0 %493, %v112
  %v495 = vpop.permute.xlu0 %494
  %497 = vset.pattern.permute.xlu0 1
  %498 = vperm.xlu0 %497, %v113
  %v499 = vpop.permute.xlu0 %498
  %501 = vset.pattern.permute.xlu0 1
  %502 = vperm.xlu0 %501, %v114
  %v503 = vpop.permute.xlu0 %502
  %505 = vset.pattern.permute.xlu0 1
  %506 = vperm.xlu0 %505, %v115
  %v507 = vpop.permute.xlu0 %506
  %509 = vset.pattern.permute.xlu0 1
  %510 = vperm.xlu0 %509, %v116
  %v511 = vpop.permute.xlu0 %510
  %513 = vset.pattern.permute.xlu0 1
  %514 = vperm.xlu0 %513, %v117
  %v515 = vpop.permute.xlu0 %514
  %517 = vset.pattern.permute.xlu0 1
  %518 = vperm.xlu0 %517, %v118
  %v519 = vpop.permute.xlu0 %518
  %521 = vset.pattern.permute.xlu0 1
  %522 = vperm.xlu0 %521, %v119
  %v523 = vpop.permute.xlu0 %522
  %525 = vset.pattern.permute.xlu0 1
  %526 = vperm.xlu0 %525, %v120
  %v527 = vpop.permute.xlu0 %526
  %v529 = vmul.f32 %v142, %v483
  %v530 = vmul.f32 %v143, %v487
  %v531 = vmul.f32 %v144, %v491
  %v532 = vmul.f32 %v145, %v495
  %v533 = vmul.f32 %v146, %v499
  %v534 = vmul.f32 %v147, %v503
  %v535 = vmul.f32 %v148, %v507
  %v536 = vmul.f32 %v149, %v511
  %v537 = vmul.f32 %v150, %v515
  %v538 = vmul.f32 %v151, %v519
  %v539 = vmul.f32 %v152, %v523
  %v540 = vmul.f32 %v153, %v527
  %541 = vset.pattern.permute.xlu0 4
  %542 = vperm.xlu0 %541, %v109
  %v543 = vpop.permute.xlu0 %542
  %545 = vset.pattern.permute.xlu0 4
  %546 = vperm.xlu0 %545, %v110
  %v547 = vpop.permute.xlu0 %546
  %549 = vset.pattern.permute.xlu0 4
  %550 = vperm.xlu0 %549, %v111
  %v551 = vpop.permute.xlu0 %550
  %553 = vset.pattern.permute.xlu0 4
  %554 = vperm.xlu0 %553, %v112
  %v555 = vpop.permute.xlu0 %554
  %557 = vset.pattern.permute.xlu0 4
  %558 = vperm.xlu0 %557, %v113
  %v559 = vpop.permute.xlu0 %558
  %561 = vset.pattern.permute.xlu0 4
  %562 = vperm.xlu0 %561, %v114
  %v563 = vpop.permute.xlu0 %562
  %565 = vset.pattern.permute.xlu0 4
  %566 = vperm.xlu0 %565, %v115
  %v567 = vpop.permute.xlu0 %566
  %569 = vset.pattern.permute.xlu0 4
  %570 = vperm.xlu0 %569, %v116
  %v571 = vpop.permute.xlu0 %570
  %573 = vset.pattern.permute.xlu0 4
  %574 = vperm.xlu0 %573, %v117
  %v575 = vpop.permute.xlu0 %574
  %577 = vset.pattern.permute.xlu0 4
  %578 = vperm.xlu0 %577, %v118
  %v579 = vpop.permute.xlu0 %578
  %581 = vset.pattern.permute.xlu0 4
  %582 = vperm.xlu0 %581, %v119
  %v583 = vpop.permute.xlu0 %582
  %585 = vset.pattern.permute.xlu0 4
  %586 = vperm.xlu0 %585, %v120
  %v587 = vpop.permute.xlu0 %586
  %v589 = vmul.f32 %v23, %v543
  %v590 = vmul.f32 %v24, %v547
  %v591 = vmul.f32 %v25, %v551
  %v592 = vmul.f32 %v26, %v555
  %v593 = vmul.f32 %v27, %v559
  %v594 = vmul.f32 %v28, %v563
  %v595 = vmul.f32 %v29, %v567
  %v596 = vmul.f32 %v30, %v571
  %v597 = vmul.f32 %v31, %v575
  %v598 = vmul.f32 %v32, %v579
  %v599 = vmul.f32 %v33, %v583
  %v600 = vmul.f32 %v34, %v587
  %613 = vrot.lane.b32.xlu0 %v589, 1
  %v614 = vpop.permute.xlu0 %613
  %615 = vrot.lane.b32.xlu0 %v590, 1
  %v616 = vpop.permute.xlu0 %615
  %617 = vrot.lane.b32.xlu0 %v591, 1
  %v618 = vpop.permute.xlu0 %617
  %619 = vrot.lane.b32.xlu0 %v592, 1
  %v620 = vpop.permute.xlu0 %619
  %621 = vrot.lane.b32.xlu0 %v593, 1
  %v622 = vpop.permute.xlu0 %621
  %623 = vrot.lane.b32.xlu0 %v594, 1
  %v624 = vpop.permute.xlu0 %623
  %625 = vrot.lane.b32.xlu0 %v595, 1
  %v626 = vpop.permute.xlu0 %625
  %627 = vrot.lane.b32.xlu0 %v596, 1
  %v628 = vpop.permute.xlu0 %627
  %629 = vrot.lane.b32.xlu0 %v597, 1
  %v630 = vpop.permute.xlu0 %629
  %631 = vrot.lane.b32.xlu0 %v598, 1
  %v632 = vpop.permute.xlu0 %631
  %633 = vrot.lane.b32.xlu0 %v599, 1
  %v634 = vpop.permute.xlu0 %633
  %635 = vrot.lane.b32.xlu0 %v600, 1
  %v636 = vpop.permute.xlu0 %635
  %v649 = vadd.f32 %v529, %v614
  %v650 = vadd.f32 %v530, %v616
  %v651 = vadd.f32 %v531, %v618
  %v652 = vadd.f32 %v532, %v620
  %v653 = vadd.f32 %v533, %v622
  %v654 = vadd.f32 %v534, %v624
  %v655 = vadd.f32 %v535, %v626
  %v656 = vadd.f32 %v536, %v628
  %v657 = vadd.f32 %v537, %v630
  %v658 = vadd.f32 %v538, %v632
  %v659 = vadd.f32 %v539, %v634
  %v660 = vadd.f32 %v540, %v636
  %661 = vset.pattern.permute.xlu0 7
  %662 = vperm.xlu0 %661, %v109
  %v663 = vpop.permute.xlu0 %662
  %665 = vset.pattern.permute.xlu0 7
  %666 = vperm.xlu0 %665, %v110
  %v667 = vpop.permute.xlu0 %666
  %669 = vset.pattern.permute.xlu0 7
  %670 = vperm.xlu0 %669, %v111
  %v671 = vpop.permute.xlu0 %670
  %673 = vset.pattern.permute.xlu0 7
  %674 = vperm.xlu0 %673, %v112
  %v675 = vpop.permute.xlu0 %674
  %677 = vset.pattern.permute.xlu0 7
  %678 = vperm.xlu0 %677, %v113
  %v679 = vpop.permute.xlu0 %678
  %681 = vset.pattern.permute.xlu0 7
  %682 = vperm.xlu0 %681, %v114
  %v683 = vpop.permute.xlu0 %682
  %685 = vset.pattern.permute.xlu0 7
  %686 = vperm.xlu0 %685, %v115
  %v687 = vpop.permute.xlu0 %686
  %689 = vset.pattern.permute.xlu0 7
  %690 = vperm.xlu0 %689, %v116
  %v691 = vpop.permute.xlu0 %690
  %693 = vset.pattern.permute.xlu0 7
  %694 = vperm.xlu0 %693, %v117
  %v695 = vpop.permute.xlu0 %694
  %697 = vset.pattern.permute.xlu0 7
  %698 = vperm.xlu0 %697, %v118
  %v699 = vpop.permute.xlu0 %698
  %701 = vset.pattern.permute.xlu0 7
  %702 = vperm.xlu0 %701, %v119
  %v703 = vpop.permute.xlu0 %702
  %705 = vset.pattern.permute.xlu0 7
  %706 = vperm.xlu0 %705, %v120
  %v707 = vpop.permute.xlu0 %706
  %v709 = vmul.f32 %v142, %v663
  %v710 = vmul.f32 %v143, %v667
  %v711 = vmul.f32 %v144, %v671
  %v712 = vmul.f32 %v145, %v675
  %v713 = vmul.f32 %v146, %v679
  %v714 = vmul.f32 %v147, %v683
  %v715 = vmul.f32 %v148, %v687
  %v716 = vmul.f32 %v149, %v691
  %v717 = vmul.f32 %v150, %v695
  %v718 = vmul.f32 %v151, %v699
  %v719 = vmul.f32 %v152, %v703
  %v720 = vmul.f32 %v153, %v707
  %733 = vrot.lane.b32.xlu0 %v709, 114
  %v734 = vpop.permute.xlu0 %733
  %735 = vrot.lane.b32.xlu0 %v710, 114
  %v736 = vpop.permute.xlu0 %735
  %737 = vrot.lane.b32.xlu0 %v711, 114
  %v738 = vpop.permute.xlu0 %737
  %739 = vrot.lane.b32.xlu0 %v712, 114
  %v740 = vpop.permute.xlu0 %739
  %741 = vrot.lane.b32.xlu0 %v713, 114
  %v742 = vpop.permute.xlu0 %741
  %743 = vrot.lane.b32.xlu0 %v714, 114
  %v744 = vpop.permute.xlu0 %743
  %745 = vrot.lane.b32.xlu0 %v715, 114
  %v746 = vpop.permute.xlu0 %745
  %747 = vrot.lane.b32.xlu0 %v716, 114
  %v748 = vpop.permute.xlu0 %747
  %749 = vrot.lane.b32.xlu0 %v717, 114
  %v750 = vpop.permute.xlu0 %749
  %751 = vrot.lane.b32.xlu0 %v718, 114
  %v752 = vpop.permute.xlu0 %751
  %753 = vrot.lane.b32.xlu0 %v719, 114
  %v754 = vpop.permute.xlu0 %753
  %755 = vrot.lane.b32.xlu0 %v720, 114
  %v756 = vpop.permute.xlu0 %755
  %v769 = vadd.f32 %v649, %v734
  %v770 = vadd.f32 %v650, %v736
  %v771 = vadd.f32 %v651, %v738
  %v772 = vadd.f32 %v652, %v740
  %v773 = vadd.f32 %v653, %v742
  %v774 = vadd.f32 %v654, %v744
  %v775 = vadd.f32 %v655, %v746
  %v776 = vadd.f32 %v656, %v748
  %v777 = vadd.f32 %v657, %v750
  %v778 = vadd.f32 %v658, %v752
  %v779 = vadd.f32 %v659, %v754
  %v780 = vadd.f32 %v660, %v756
  %793 = vrot.lane.b32.xlu0 %v769, 127
  %v794 = vpop.permute.xlu0 %793
  %795 = vrot.lane.b32.xlu0 %v770, 127
  %v796 = vpop.permute.xlu0 %795
  %797 = vrot.lane.b32.xlu0 %v771, 127
  %v798 = vpop.permute.xlu0 %797
  %799 = vrot.lane.b32.xlu0 %v772, 127
  %v800 = vpop.permute.xlu0 %799
  %801 = vrot.lane.b32.xlu0 %v773, 127
  %v802 = vpop.permute.xlu0 %801
  %803 = vrot.lane.b32.xlu0 %v774, 127
  %v804 = vpop.permute.xlu0 %803
  %805 = vrot.lane.b32.xlu0 %v775, 127
  %v806 = vpop.permute.xlu0 %805
  %807 = vrot.lane.b32.xlu0 %v776, 127
  %v808 = vpop.permute.xlu0 %807
  %809 = vrot.lane.b32.xlu0 %v777, 127
  %v810 = vpop.permute.xlu0 %809
  %811 = vrot.lane.b32.xlu0 %v778, 127
  %v812 = vpop.permute.xlu0 %811
  %813 = vrot.lane.b32.xlu0 %v779, 127
  %v814 = vpop.permute.xlu0 %813
  %815 = vrot.lane.b32.xlu0 %v780, 127
  %v816 = vpop.permute.xlu0 %815
  %v829 = vadd.f32 %v469, %v794
  %v830 = vadd.f32 %v470, %v796
  %v831 = vadd.f32 %v471, %v798
  %v832 = vadd.f32 %v472, %v800
  %v833 = vadd.f32 %v473, %v802
  %v834 = vadd.f32 %v474, %v804
  %v835 = vadd.f32 %v475, %v806
  %v836 = vadd.f32 %v476, %v808
  %v837 = vadd.f32 %v477, %v810
  %v838 = vadd.f32 %v478, %v812
  %v839 = vadd.f32 %v479, %v814
  %v840 = vadd.f32 %v480, %v816
  %841 = vset.pattern.permute.xlu0 2
  %842 = vperm.xlu0 %841, %v109
  %v843 = vpop.permute.xlu0 %842
  %845 = vset.pattern.permute.xlu0 2
  %846 = vperm.xlu0 %845, %v110
  %v847 = vpop.permute.xlu0 %846
  %849 = vset.pattern.permute.xlu0 2
  %850 = vperm.xlu0 %849, %v111
  %v851 = vpop.permute.xlu0 %850
  %853 = vset.pattern.permute.xlu0 2
  %854 = vperm.xlu0 %853, %v112
  %v855 = vpop.permute.xlu0 %854
  %857 = vset.pattern.permute.xlu0 2
  %858 = vperm.xlu0 %857, %v113
  %v859 = vpop.permute.xlu0 %858
  %861 = vset.pattern.permute.xlu0 2
  %862 = vperm.xlu0 %861, %v114
  %v863 = vpop.permute.xlu0 %862
  %865 = vset.pattern.permute.xlu0 2
  %866 = vperm.xlu0 %865, %v115
  %v867 = vpop.permute.xlu0 %866
  %869 = vset.pattern.permute.xlu0 2
  %870 = vperm.xlu0 %869, %v116
  %v871 = vpop.permute.xlu0 %870
  %873 = vset.pattern.permute.xlu0 2
  %874 = vperm.xlu0 %873, %v117
  %v875 = vpop.permute.xlu0 %874
  %877 = vset.pattern.permute.xlu0 2
  %878 = vperm.xlu0 %877, %v118
  %v879 = vpop.permute.xlu0 %878
  %881 = vset.pattern.permute.xlu0 2
  %882 = vperm.xlu0 %881, %v119
  %v883 = vpop.permute.xlu0 %882
  %885 = vset.pattern.permute.xlu0 2
  %886 = vperm.xlu0 %885, %v120
  %v887 = vpop.permute.xlu0 %886
  %v889 = vmul.f32 %v142, %v843
  %v890 = vmul.f32 %v143, %v847
  %v891 = vmul.f32 %v144, %v851
  %v892 = vmul.f32 %v145, %v855
  %v893 = vmul.f32 %v146, %v859
  %v894 = vmul.f32 %v147, %v863
  %v895 = vmul.f32 %v148, %v867
  %v896 = vmul.f32 %v149, %v871
  %v897 = vmul.f32 %v150, %v875
  %v898 = vmul.f32 %v151, %v879
  %v899 = vmul.f32 %v152, %v883
  %v900 = vmul.f32 %v153, %v887
  %901 = vset.pattern.permute.xlu0 5
  %902 = vperm.xlu0 %901, %v109
  %v903 = vpop.permute.xlu0 %902
  %905 = vset.pattern.permute.xlu0 5
  %906 = vperm.xlu0 %905, %v110
  %v907 = vpop.permute.xlu0 %906
  %909 = vset.pattern.permute.xlu0 5
  %910 = vperm.xlu0 %909, %v111
  %v911 = vpop.permute.xlu0 %910
  %913 = vset.pattern.permute.xlu0 5
  %914 = vperm.xlu0 %913, %v112
  %v915 = vpop.permute.xlu0 %914
  %917 = vset.pattern.permute.xlu0 5
  %918 = vperm.xlu0 %917, %v113
  %v919 = vpop.permute.xlu0 %918
  %921 = vset.pattern.permute.xlu0 5
  %922 = vperm.xlu0 %921, %v114
  %v923 = vpop.permute.xlu0 %922
  %925 = vset.pattern.permute.xlu0 5
  %926 = vperm.xlu0 %925, %v115
  %v927 = vpop.permute.xlu0 %926
  %929 = vset.pattern.permute.xlu0 5
  %930 = vperm.xlu0 %929, %v116
  %v931 = vpop.permute.xlu0 %930
  %933 = vset.pattern.permute.xlu0 5
  %934 = vperm.xlu0 %933, %v117
  %v935 = vpop.permute.xlu0 %934
  %937 = vset.pattern.permute.xlu0 5
  %938 = vperm.xlu0 %937, %v118
  %v939 = vpop.permute.xlu0 %938
  %941 = vset.pattern.permute.xlu0 5
  %942 = vperm.xlu0 %941, %v119
  %v943 = vpop.permute.xlu0 %942
  %945 = vset.pattern.permute.xlu0 5
  %946 = vperm.xlu0 %945, %v120
  %v947 = vpop.permute.xlu0 %946
  %v949 = vmul.f32 %v142, %v903
  %v950 = vmul.f32 %v143, %v907
  %v951 = vmul.f32 %v144, %v911
  %v952 = vmul.f32 %v145, %v915
  %v953 = vmul.f32 %v146, %v919
  %v954 = vmul.f32 %v147, %v923
  %v955 = vmul.f32 %v148, %v927
  %v956 = vmul.f32 %v149, %v931
  %v957 = vmul.f32 %v150, %v935
  %v958 = vmul.f32 %v151, %v939
  %v959 = vmul.f32 %v152, %v943
  %v960 = vmul.f32 %v153, %v947
  %973 = vrot.lane.b32.xlu0 %v949, 121
  %v974 = vpop.permute.xlu0 %973
  %975 = vrot.lane.b32.xlu0 %v950, 121
  %v976 = vpop.permute.xlu0 %975
  %977 = vrot.lane.b32.xlu0 %v951, 121
  %v978 = vpop.permute.xlu0 %977
  %979 = vrot.lane.b32.xlu0 %v952, 121
  %v980 = vpop.permute.xlu0 %979
  %981 = vrot.lane.b32.xlu0 %v953, 121
  %v982 = vpop.permute.xlu0 %981
  %983 = vrot.lane.b32.xlu0 %v954, 121
  %v984 = vpop.permute.xlu0 %983
  %985 = vrot.lane.b32.xlu0 %v955, 121
  %v986 = vpop.permute.xlu0 %985
  %987 = vrot.lane.b32.xlu0 %v956, 121
  %v988 = vpop.permute.xlu0 %987
  %989 = vrot.lane.b32.xlu0 %v957, 121
  %v990 = vpop.permute.xlu0 %989
  %991 = vrot.lane.b32.xlu0 %v958, 121
  %v992 = vpop.permute.xlu0 %991
  %993 = vrot.lane.b32.xlu0 %v959, 121
  %v994 = vpop.permute.xlu0 %993
  %995 = vrot.lane.b32.xlu0 %v960, 121
  %v996 = vpop.permute.xlu0 %995
  %v1009 = vadd.f32 %v889, %v974
  %v1010 = vadd.f32 %v890, %v976
  %v1011 = vadd.f32 %v891, %v978
  %v1012 = vadd.f32 %v892, %v980
  %v1013 = vadd.f32 %v893, %v982
  %v1014 = vadd.f32 %v894, %v984
  %v1015 = vadd.f32 %v895, %v986
  %v1016 = vadd.f32 %v896, %v988
  %v1017 = vadd.f32 %v897, %v990
  %v1018 = vadd.f32 %v898, %v992
  %v1019 = vadd.f32 %v899, %v994
  %v1020 = vadd.f32 %v900, %v996
  %1021 = vset.pattern.permute.xlu0 8
  %1022 = vperm.xlu0 %1021, %v109
  %v1023 = vpop.permute.xlu0 %1022
  %1025 = vset.pattern.permute.xlu0 8
  %1026 = vperm.xlu0 %1025, %v110
  %v1027 = vpop.permute.xlu0 %1026
  %1029 = vset.pattern.permute.xlu0 8
  %1030 = vperm.xlu0 %1029, %v111
  %v1031 = vpop.permute.xlu0 %1030
  %1033 = vset.pattern.permute.xlu0 8
  %1034 = vperm.xlu0 %1033, %v112
  %v1035 = vpop.permute.xlu0 %1034
  %1037 = vset.pattern.permute.xlu0 8
  %1038 = vperm.xlu0 %1037, %v113
  %v1039 = vpop.permute.xlu0 %1038
  %1041 = vset.pattern.permute.xlu0 8
  %1042 = vperm.xlu0 %1041, %v114
  %v1043 = vpop.permute.xlu0 %1042
  %1045 = vset.pattern.permute.xlu0 8
  %1046 = vperm.xlu0 %1045, %v115
  %v1047 = vpop.permute.xlu0 %1046
  %1049 = vset.pattern.permute.xlu0 8
  %1050 = vperm.xlu0 %1049, %v116
  %v1051 = vpop.permute.xlu0 %1050
  %1053 = vset.pattern.permute.xlu0 8
  %1054 = vperm.xlu0 %1053, %v117
  %v1055 = vpop.permute.xlu0 %1054
  %1057 = vset.pattern.permute.xlu0 8
  %1058 = vperm.xlu0 %1057, %v118
  %v1059 = vpop.permute.xlu0 %1058
  %1061 = vset.pattern.permute.xlu0 8
  %1062 = vperm.xlu0 %1061, %v119
  %v1063 = vpop.permute.xlu0 %1062
  %1065 = vset.pattern.permute.xlu0 8
  %1066 = vperm.xlu0 %1065, %v120
  %v1067 = vpop.permute.xlu0 %1066
  %v1069 = vmul.f32 %v142, %v1023
  %v1070 = vmul.f32 %v143, %v1027
  %v1071 = vmul.f32 %v144, %v1031
  %v1072 = vmul.f32 %v145, %v1035
  %v1073 = vmul.f32 %v146, %v1039
  %v1074 = vmul.f32 %v147, %v1043
  %v1075 = vmul.f32 %v148, %v1047
  %v1076 = vmul.f32 %v149, %v1051
  %v1077 = vmul.f32 %v150, %v1055
  %v1078 = vmul.f32 %v151, %v1059
  %v1079 = vmul.f32 %v152, %v1063
  %v1080 = vmul.f32 %v153, %v1067
  %1093 = vrot.lane.b32.xlu0 %v1069, 114
  %v1094 = vpop.permute.xlu0 %1093
  %1095 = vrot.lane.b32.xlu0 %v1070, 114
  %v1096 = vpop.permute.xlu0 %1095
  %1097 = vrot.lane.b32.xlu0 %v1071, 114
  %v1098 = vpop.permute.xlu0 %1097
  %1099 = vrot.lane.b32.xlu0 %v1072, 114
  %v1100 = vpop.permute.xlu0 %1099
  %1101 = vrot.lane.b32.xlu0 %v1073, 114
  %v1102 = vpop.permute.xlu0 %1101
  %1103 = vrot.lane.b32.xlu0 %v1074, 114
  %v1104 = vpop.permute.xlu0 %1103
  %1105 = vrot.lane.b32.xlu0 %v1075, 114
  %v1106 = vpop.permute.xlu0 %1105
  %1107 = vrot.lane.b32.xlu0 %v1076, 114
  %v1108 = vpop.permute.xlu0 %1107
  %1109 = vrot.lane.b32.xlu0 %v1077, 114
  %v1110 = vpop.permute.xlu0 %1109
  %1111 = vrot.lane.b32.xlu0 %v1078, 114
  %v1112 = vpop.permute.xlu0 %1111
  %1113 = vrot.lane.b32.xlu0 %v1079, 114
  %v1114 = vpop.permute.xlu0 %1113
  %1115 = vrot.lane.b32.xlu0 %v1080, 114
  %v1116 = vpop.permute.xlu0 %1115
  %v1129 = vadd.f32 %v1009, %v1094
  %v1130 = vadd.f32 %v1010, %v1096
  %v1131 = vadd.f32 %v1011, %v1098
  %v1132 = vadd.f32 %v1012, %v1100
  %v1133 = vadd.f32 %v1013, %v1102
  %v1134 = vadd.f32 %v1014, %v1104
  %v1135 = vadd.f32 %v1015, %v1106
  %v1136 = vadd.f32 %v1016, %v1108
  %v1137 = vadd.f32 %v1017, %v1110
  %v1138 = vadd.f32 %v1018, %v1112
  %v1139 = vadd.f32 %v1019, %v1114
  %v1140 = vadd.f32 %v1020, %v1116
  %vm1141 = vcmp.lt.s32.totalorder %v141, 6
  %v1142 = vsel %vm1141, 1, 0
  %vm1143 = vcmp.eq.s32.totalorder %v1142, 1
  %1156 = vrot.lane.b32.xlu0 %v1129, 126
  %v1157 = vpop.permute.xlu0 %1156
  %1158 = vrot.lane.b32.xlu0 %v1130, 126
  %v1159 = vpop.permute.xlu0 %1158
  %1160 = vrot.lane.b32.xlu0 %v1131, 126
  %v1161 = vpop.permute.xlu0 %1160
  %1162 = vrot.lane.b32.xlu0 %v1132, 126
  %v1163 = vpop.permute.xlu0 %1162
  %1164 = vrot.lane.b32.xlu0 %v1133, 126
  %v1165 = vpop.permute.xlu0 %1164
  %1166 = vrot.lane.b32.xlu0 %v1134, 126
  %v1167 = vpop.permute.xlu0 %1166
  %1168 = vrot.lane.b32.xlu0 %v1135, 126
  %v1169 = vpop.permute.xlu0 %1168
  %1170 = vrot.lane.b32.xlu0 %v1136, 126
  %v1171 = vpop.permute.xlu0 %1170
  %1172 = vrot.lane.b32.xlu0 %v1137, 126
  %v1173 = vpop.permute.xlu0 %1172
  %1174 = vrot.lane.b32.xlu0 %v1138, 126
  %v1175 = vpop.permute.xlu0 %1174
  %1176 = vrot.lane.b32.xlu0 %v1139, 126
  %v1177 = vpop.permute.xlu0 %1176
  %1178 = vrot.lane.b32.xlu0 %v1140, 126
  %v1179 = vpop.permute.xlu0 %1178
  %v1192 = vsel %vm1143, %v1157, 0.0
  %v1193 = vsel %vm1143, %v1159, 0.0
  %v1194 = vsel %vm1143, %v1161, 0.0
  %v1195 = vsel %vm1143, %v1163, 0.0
  %v1196 = vsel %vm1143, %v1165, 0.0
  %v1197 = vsel %vm1143, %v1167, 0.0
  %v1198 = vsel %vm1143, %v1169, 0.0
  %v1199 = vsel %vm1143, %v1171, 0.0
  %v1200 = vsel %vm1143, %v1173, 0.0
  %v1201 = vsel %vm1143, %v1175, 0.0
  %v1202 = vsel %vm1143, %v1177, 0.0
  %v1203 = vsel %vm1143, %v1179, 0.0
  %v1204 = vadd.f32 %v829, %v1192
  %v1205 = vadd.f32 %v830, %v1193
  %v1206 = vadd.f32 %v831, %v1194
  %v1207 = vadd.f32 %v832, %v1195
  %v1208 = vadd.f32 %v833, %v1196
  %v1209 = vadd.f32 %v834, %v1197
  %v1210 = vadd.f32 %v835, %v1198
  %v1211 = vadd.f32 %v836, %v1199
  %v1212 = vadd.f32 %v837, %v1200
  %v1213 = vadd.f32 %v838, %v1201
  %v1214 = vadd.f32 %v839, %v1202
  %v1215 = vadd.f32 %v840, %v1203
  %vm1216 = vcmask 400384
  %1217 = vst.msk [vmem:[%s2] sm:$0xff] %vm1216, %v1204
  %1218 = vst.msk [vmem:[%s2 + $0x8] sm:$0xff] %vm1216, %v1205
  %1219 = vst.msk [vmem:[%s2 + $0x10] sm:$0xff] %vm1216, %v1206
  %1220 = vst.msk [vmem:[%s2 + $0x18] sm:$0xff] %vm1216, %v1207
  %1221 = vst.msk [vmem:[%s2 + $0x20] sm:$0xff] %vm1216, %v1208
  %1222 = vst.msk [vmem:[%s2 + $0x28] sm:$0xff] %vm1216, %v1209
  %1223 = vst.msk [vmem:[%s2 + $0x30] sm:$0xff] %vm1216, %v1210
  %1224 = vst.msk [vmem:[%s2 + $0x38] sm:$0xff] %vm1216, %v1211
  %1225 = vst.msk [vmem:[%s2 + $0x40] sm:$0xff] %vm1216, %v1212
  %1226 = vst.msk [vmem:[%s2 + $0x48] sm:$0xff] %vm1216, %v1213
  %1227 = vst.msk [vmem:[%s2 + $0x50] sm:$0xff] %vm1216, %v1214
  %1228 = vst.msk [vmem:[%s2 + $0x58] sm:$0xff] %vm1216, %v1215
  // Predicated region
  $region10: #{tpu_custom_call.1} parent=0 // pred_check
    _
  $region11: #{tpu_custom_call.1} parent=0 // pred_check_branch
    %1230 = sbr.rel (0) target = $region13
  $region12: #{tpu_custom_call.1} parent=0 // pred_region
    _
  $region13: #{tpu_custom_call.1} parent=0 // pred_fallthru
    _
  // Predicated region
  $region14: #{tpu_custom_call.1} parent=0 // pred_check
    _
  $region15: #{tpu_custom_call.1} parent=0 // pred_check_branch
    %1232 = sbr.rel (0) target = $region17
  $region16: #{tpu_custom_call.1} parent=0 // pred_region
    _
  $region17: #{tpu_custom_call.1} parent=0 // pred_fallthru
    _

</llo_original>
